<compile_context>
chip_gen: v5e
topology: v5e:2x2
jax: 0.10.0
libtpu: 0.0.40
codegen_flags: <defaults>
</compile_context>

<pallas_src>
from typing import NamedTuple

import jax
import jax.numpy as jnp
from jax.experimental import pallas as pl
from jax.experimental.pallas import tpu as pltpu


def _round_up(n, m):
    return ((n + m - 1) // m) * m


# ---------------------------------------------------------------------------
# Kernel
# ---------------------------------------------------------------------------
def receiver_kernel(x_ref, w1_ref, b1_ref, w2_ref, b2_ref, o_ref):
    # x_ref : (tb, IN)    f32   (cast to bf16 in-kernel)
    # w1_ref: (IN, H)     bf16
    # b1_ref: (1, H)      f32
    # w2_ref: (H, OUTp)   bf16  (padded OUT columns are zero)
    # b2_ref: (1, OUTp)   f32   (padded OUT columns are -1e30)
    # o_ref : (tb, OUTp)  f32   (lane-dense writeback; wrapper slices real OUT)
    x = x_ref[...].astype(jnp.bfloat16)                                 # VPU cast
    h = jnp.dot(x, w1_ref[...], preferred_element_type=jnp.float32)     # MXU, f32 acc
    h = jnp.maximum(h + b1_ref[...], 0.0)                               # f32 bias + ReLU
    logits = jnp.dot(h.astype(jnp.bfloat16), w2_ref[...],
                     preferred_element_type=jnp.float32)                # MXU, f32 acc
    logits = logits + b2_ref[...]                                       # pad lanes -> -1e30
    # numerically-stable softmax over the lane-dense padded axis
    m = jnp.max(logits, axis=-1, keepdims=True)
    e = jnp.exp(logits - m)                                             # pad lanes -> 0
    denom = jnp.sum(e, axis=-1, keepdims=True)
    o_ref[...] = (e / denom).astype(o_ref.dtype)                        # exact normalize


# ---------------------------------------------------------------------------
# One-time parameter preparation (hoisted out of the per-call path)
# ---------------------------------------------------------------------------
class ReceiverParams(NamedTuple):
    w1: jax.Array      # (IN, H)    bf16
    b1: jax.Array      # (1, H)     f32
    w2: jax.Array      # (H, OUTp)  bf16, zero-padded columns
    b2: jax.Array      # (1, OUTp)  f32,  -1e30 in padded columns
    out_features: int  # real OUT


def prepare_receiver_params(w1, b1, w2, b2):
    """w1: (IN, H); b1: (H,); w2: (H, OUT); b2: (OUT,). Call once, reuse per forward."""
    IN, H = w1.shape
    OUT = w2.shape[1]
    OUTp = _round_up(OUT, 128)

    w1b = w1.astype(jnp.bfloat16)                                   # (IN, H)
    b1f = b1.reshape(1, H).astype(jnp.float32)                      # (1, H)
    w2p = jnp.zeros((H, OUTp), jnp.bfloat16).at[:, :OUT].set(w2.astype(jnp.bfloat16))
    # Padded logit lanes get a huge negative f32 bias -> exp underflows to 0, so
    # the softmax over the padded axis equals softmax over the real OUT columns.
    b2p = jnp.full((1, OUTp), -1e30, jnp.float32).at[:, :OUT].set(
        b2.reshape(1, OUT).astype(jnp.float32))

    return ReceiverParams(w1b, b1f, w2p, b2p, OUT)


# ---------------------------------------------------------------------------
# Forward wrapper
# ---------------------------------------------------------------------------
def _pick_tb(B, tb_max=1024):
    """Large tiles; split only when there is enough work for >=2 real steps."""
    if B <= 2 * tb_max:
        return B                      # single grid step
    # largest multiple-of-8 divisor of B that is <= tb_max
    for t in range(tb_max - (tb_max % 8), 7, -8):
        if B % t == 0:
            return t
    return B                          # fallback: single step


def receiver_forward(x, params: ReceiverParams, *, tb=None):
    """x: (B, IN) f32. Returns (B, OUT) f32 softmax probabilities."""
    B, IN = x.shape
    H = params.w1.shape[1]
    OUTp = params.w2.shape[1]
    OUT = params.out_features

    if tb is None:
        tb = _pick_tb(B)
    assert B % tb == 0, "batch must divide by the batch tile"
    num_steps = B // tb
    grid = (num_steps,)

    # Megacore sharding only pays off when each step still has real work.
    semantics = ("parallel",) if (num_steps >= 2 and tb >= 256) else ("arbitrary",)

    out_padded = pl.pallas_call(
        receiver_kernel,
        out_shape=jax.ShapeDtypeStruct((B, OUTp), jnp.float32),
        grid_spec=pltpu.PrefetchScalarGridSpec(
            num_scalar_prefetch=0,
            grid=grid,
            in_specs=[
                pl.BlockSpec((tb, IN), lambda i: (i, 0)),     # x tile (f32, streamed)
                pl.BlockSpec((IN, H), lambda i: (0, 0)),      # W1 (grid-invariant, resident)
                pl.BlockSpec((1, H), lambda i: (0, 0)),       # b1
                pl.BlockSpec((H, OUTp), lambda i: (0, 0)),    # W2 (no H padding)
                pl.BlockSpec((1, OUTp), lambda i: (0, 0)),    # b2 (padded lanes = -1e30)
            ],
            out_specs=pl.BlockSpec((tb, OUTp), lambda i: (i, 0)),  # lane-dense writeback
        ),
        compiler_params=pltpu.CompilerParams(dimension_semantics=semantics),
    )(x, params.w1, params.b1, params.w2, params.b2)

    return out_padded[:, :OUT]


def reference_forward(x, w1, b1, w2, b2):
    h = jnp.maximum(x @ w1 + b1, 0.0)
    logits = h @ w2 + b2
    return jax.nn.softmax(logits, axis=-1)


if __name__ == "__main__":
    # Small shapes consistent with the module: input=16, hidden=32, output=16.
    # Batch 64 -> tb=64, grid=(1,): single-step, overhead-minimal configuration.
    B, IN, H, OUT = 64, 16, 32, 16

    key = jax.random.PRNGKey(0)
    kx, k1, k2, k3, k4 = jax.random.split(key, 5)

    x = jax.random.normal(kx, (B, IN), dtype=jnp.float32)

    # Deterministic parameter init (uniform, like PyTorch's default Linear init scale).
    bound1 = 1.0 / (IN ** 0.5)
    w1 = jax.random.uniform(k1, (IN, H), jnp.float32, -bound1, bound1)
    b1 = jax.random.uniform(k2, (H,), jnp.float32, -bound1, bound1)
    bound2 = 1.0 / (H ** 0.5)
    w2 = jax.random.uniform(k3, (H, OUT), jnp.float32, -bound2, bound2)
    b2 = jax.random.uniform(k4, (OUT,), jnp.float32, -bound2, bound2)

    # One-time prep (bf16 cast + OUT padding) — cached, NOT on the per-call path.
    params = prepare_receiver_params(w1, b1, w2, b2)
    params = ReceiverParams(*(jax.block_until_ready(a) for a in params[:4]),
                            params.out_features)

    out = receiver_forward(x, params)
    out = jax.block_until_ready(out)

    ref = reference_forward(x, w1, b1, w2, b2)
    assert out.shape == (B, OUT)
    # bf16 matmul operands -> loosened tolerance vs the f32 reference.
    assert jnp.allclose(out, ref, atol=1.5e-2, rtol=1.5e-2), "mismatch vs reference"
    # exact divide -> rows sum to 1 to f32 precision.
    assert jnp.allclose(jnp.sum(out, axis=-1), 1.0, atol=1e-3), "softmax rows must sum to 1"

    print("KERNEL_OK")
</pallas_src>

<mosaic_0001>
module attributes {stable_mosaic.version = 11 : i64} {
  func.func @receiver_kernel(%arg0: i32, %arg1: memref<64x16xf32, #tpu.memory_space<vmem>>, %arg2: memref<16x32xbf16, #tpu.memory_space<vmem>>, %arg3: memref<1x32xf32, #tpu.memory_space<vmem>>, %arg4: memref<32x128xbf16, #tpu.memory_space<vmem>>, %arg5: memref<1x128xf32, #tpu.memory_space<vmem>>, %arg6: memref<64x128xf32, #tpu.memory_space<vmem>>) attributes {dimension_semantics = [#tpu.dimension_semantics<arbitrary>], iteration_bounds = array<i64: 1>, scalar_prefetch = 0 : i64, scratch_operands = 0 : i64, tpu.core_type = #tpu.core_type<tc>, window_params = [{transform_indices = @transform_0, window_bounds = array<i64: 64, 16>}, {pipeline_mode = #tpu.pipeline_mode<synchronous>, transform_indices = @transform_1, window_bounds = array<i64: 16, 32>}, {pipeline_mode = #tpu.pipeline_mode<synchronous>, transform_indices = @transform_2, window_bounds = array<i64: 1, 32>}, {pipeline_mode = #tpu.pipeline_mode<synchronous>, transform_indices = @transform_3, window_bounds = array<i64: 32, 128>}, {pipeline_mode = #tpu.pipeline_mode<synchronous>, transform_indices = @transform_4, window_bounds = array<i64: 1, 128>}, {transform_indices = @transform_5, window_bounds = array<i64: 64, 128>}]} {
    %c0 = arith.constant 0 : index
    %c0_0 = arith.constant 0 : index
    %0 = vector.load %arg1[%c0, %c0_0] : memref<64x16xf32, #tpu.memory_space<vmem>>, vector<64x16xf32>
    %1 = arith.truncf %0 : vector<64x16xf32> to vector<64x16xbf16>
    %c0_1 = arith.constant 0 : index
    %c0_2 = arith.constant 0 : index
    %2 = vector.load %arg2[%c0_1, %c0_2] : memref<16x32xbf16, #tpu.memory_space<vmem>>, vector<16x32xbf16>
    %cst = arith.constant dense<0.000000e+00> : vector<64x32xf32>
    %3 = tpu.matmul %1, %2, %cst {dimension_numbers = #tpu.dot_dimension_numbers<[1], [0], [0], [1], [0, 0, 1, 1], [], []>} : vector<64x16xbf16>, vector<16x32xbf16>, vector<64x32xf32> -> vector<64x32xf32>
    %c0_3 = arith.constant 0 : index
    %c0_4 = arith.constant 0 : index
    %4 = vector.load %arg3[%c0_3, %c0_4] : memref<1x32xf32, #tpu.memory_space<vmem>>, vector<1x32xf32>
    %5 = vector.broadcast %4 : vector<1x32xf32> to vector<64x32xf32>
    %6 = arith.addf %3, %5 : vector<64x32xf32>
    %cst_5 = arith.constant 0.000000e+00 : f32
    %7 = vector.broadcast %cst_5 : f32 to vector<64x32xf32>
    %8 = arith.maximumf %6, %7 : vector<64x32xf32>
    %9 = arith.truncf %8 : vector<64x32xf32> to vector<64x32xbf16>
    %c0_6 = arith.constant 0 : index
    %c0_7 = arith.constant 0 : index
    %10 = vector.load %arg4[%c0_6, %c0_7] : memref<32x128xbf16, #tpu.memory_space<vmem>>, vector<32x128xbf16>
    %cst_8 = arith.constant dense<0.000000e+00> : vector<64x128xf32>
    %11 = tpu.matmul %9, %10, %cst_8 {dimension_numbers = #tpu.dot_dimension_numbers<[1], [0], [0], [1], [0, 0, 1, 1], [], []>} : vector<64x32xbf16>, vector<32x128xbf16>, vector<64x128xf32> -> vector<64x128xf32>
    %c0_9 = arith.constant 0 : index
    %c0_10 = arith.constant 0 : index
    %12 = vector.load %arg5[%c0_9, %c0_10] : memref<1x128xf32, #tpu.memory_space<vmem>>, vector<1x128xf32>
    %13 = vector.broadcast %12 : vector<1x128xf32> to vector<64x128xf32>
    %14 = arith.addf %11, %13 : vector<64x128xf32>
    %cst_11 = arith.constant dense<0xFF800000> : vector<64xf32>
    %15 = vector.multi_reduction <maximumf>, %14, %cst_11 [1] : vector<64x128xf32> to vector<64xf32>
    %16 = vector.shape_cast %15 : vector<64xf32> to vector<64x1xf32>
    %17 = vector.broadcast %16 : vector<64x1xf32> to vector<64x128xf32>
    %18 = arith.subf %14, %17 : vector<64x128xf32>
    %19 = math.exp %18 : vector<64x128xf32>
    %cst_12 = arith.constant dense<0.000000e+00> : vector<64xf32>
    %20 = vector.multi_reduction <add>, %19, %cst_12 [1] : vector<64x128xf32> to vector<64xf32>
    %21 = vector.shape_cast %20 : vector<64xf32> to vector<64x1xf32>
    %22 = vector.broadcast %21 : vector<64x1xf32> to vector<64x128xf32>
    %23 = arith.divf %19, %22 : vector<64x128xf32>
    %c0_13 = arith.constant 0 : index
    %c0_14 = arith.constant 0 : index
    %24 = vector.load %arg6[%c0_13, %c0_14] : memref<64x128xf32, #tpu.memory_space<vmem>>, vector<64x128xf32>
    tpu.vector_store %arg6[%c0_13, %c0_14], %23 {strides = array<i32>} : memref<64x128xf32, #tpu.memory_space<vmem>>, vector<64x128xf32>,
    return
  }
  func.func @transform_0(%arg0: i32) -> (i32, i32) {
    %c0_i32 = arith.constant 0 : i32
    %c0_i32_0 = arith.constant 0 : i32
    return %arg0, %c0_i32 : i32, i32
  }
  func.func @transform_1(%arg0: i32) -> (i32, i32) {
    %c0_i32 = arith.constant 0 : i32
    %c0_i32_0 = arith.constant 0 : i32
    %c0_i32_1 = arith.constant 0 : i32
    return %c0_i32, %c0_i32_0 : i32, i32
  }
  func.func @transform_2(%arg0: i32) -> (i32, i32) {
    %c0_i32 = arith.constant 0 : i32
    %c0_i32_0 = arith.constant 0 : i32
    %c0_i32_1 = arith.constant 0 : i32
    return %c0_i32, %c0_i32_0 : i32, i32
  }
  func.func @transform_3(%arg0: i32) -> (i32, i32) {
    %c0_i32 = arith.constant 0 : i32
    %c0_i32_0 = arith.constant 0 : i32
    %c0_i32_1 = arith.constant 0 : i32
    return %c0_i32, %c0_i32_0 : i32, i32
  }
  func.func @transform_4(%arg0: i32) -> (i32, i32) {
    %c0_i32 = arith.constant 0 : i32
    %c0_i32_0 = arith.constant 0 : i32
    %c0_i32_1 = arith.constant 0 : i32
    return %c0_i32, %c0_i32_0 : i32, i32
  }
  func.func @transform_5(%arg0: i32) -> (i32, i32) {
    %c0_i32 = arith.constant 0 : i32
    %c0_i32_0 = arith.constant 0 : i32
    return %arg0, %c0_i32 : i32, i32
  }
}

</mosaic_0001>

<llo_original>
// kernel: tpu_custom_call.1
$region0: #{tpu_custom_call.1}
  #allocation0 [shape = 'u32[]', space=smem, size = 0x4, offset = 0x4, fixed_abs, tag = 'smem constant byte address 0x4 - core index']
  #allocation1 [shape = 'u32[72,128]{1,0:T(1,128)}', space=vmem, size = 0x9000, scoped, tag = 'internal scratch']
  %s0 = inlined_call_operand.vmem [shape: f32[64,16], index: 0, kind: input, shape index: {}]
  %s1 = inlined_call_operand.vmem [shape: bf16[16,32], index: 1, kind: input, shape index: {}]
  %s2 = inlined_call_operand.vmem [shape: f32[1,32], index: 2, kind: input, shape index: {}]
  %s3 = inlined_call_operand.vmem [shape: bf16[32,128], index: 3, kind: input, shape index: {}]
  %s4 = inlined_call_operand.vmem [shape: f32[1,128], index: 4, kind: input, shape index: {}]
  %s5 = inlined_call_operand.hbm [shape: f32[64,128], index: 5, kind: output, shape index: {}]
  %s6 = sld [smem:[#allocation0]]
  $region30: #{tpu_custom_call.1} parent=0
    _
  %s8 = ssub.s32 1, %s6
  %s9 = scalar_select 0, %s8, %s6
  $region1: #{tpu_custom_call.1} parent=0
    #allocation2 [shape = 'u8[32768]{0}', space=vmem, size = 0x8000, scoped, tag = 'output window, operand 0, single buffered']
    #allocation3 [shape = 's32[1]{0}', space=sflag, size = 0x4, scoped, tag = 'scoped memory for tpu_custom_call.1']
    %10 = vsyncpa [#allocation3], 0
    // Predicated region
    $region2: #{tpu_custom_call.1} parent=1 // pred_check
      _
    $region3: #{tpu_custom_call.1} parent=1 // pred_check_branch
      %12 = sbr.rel (0) target = $region5
    $region4: #{tpu_custom_call.1} parent=1 // pred_region
      _
    $region5: #{tpu_custom_call.1} parent=1 // pred_fallthru
      _
    // Predicated region
    $region6: #{tpu_custom_call.1} parent=1 // pred_check
      _
    $region7: #{tpu_custom_call.1} parent=1 // pred_check_branch
      %14 = sbr.rel (0) target = $region9
    $region8: #{tpu_custom_call.1} parent=1 // pred_region
      _
    $region9: #{tpu_custom_call.1} parent=1 // pred_fallthru
      _
    // Predicated region
    $region10: #{tpu_custom_call.1} parent=1 // pred_check
      _
    $region11: #{tpu_custom_call.1} parent=1 // pred_check_branch
      %16 = sbr.rel (0) target = $region13
    $region12: #{tpu_custom_call.1} parent=1 // pred_region
      _
    $region13: #{tpu_custom_call.1} parent=1 // pred_fallthru
      _
    // Predicated region
    $region14: #{tpu_custom_call.1} parent=1 // pred_check
      _
    $region15: #{tpu_custom_call.1} parent=1 // pred_check_branch
      %18 = sbr.rel (0) target = $region17
    $region16: #{tpu_custom_call.1} parent=1 // pred_region
      _
    $region17: #{tpu_custom_call.1} parent=1 // pred_fallthru
      _
    // Predicated region
    $region18: #{tpu_custom_call.1} parent=1 // pred_check
      _
    $region19: #{tpu_custom_call.1} parent=1 // pred_check_branch
      %20 = sbr.rel (0) target = $region21
    $region20: #{tpu_custom_call.1} parent=1 // pred_region
      _
    $region21: #{tpu_custom_call.1} parent=1 // pred_fallthru
      _
    %v22 = vld [vmem:[%s0] sm:$0xff]
    %v23 = vld [vmem:[%s0 + $0x8] sm:$0xff]
    %v24 = vld [vmem:[%s0 + $0x10] sm:$0xff]
    %v25 = vld [vmem:[%s0 + $0x18] sm:$0xff]
    %v26 = vld [vmem:[%s0 + $0x20] sm:$0xff]
    %v27 = vld [vmem:[%s0 + $0x28] sm:$0xff]
    %v28 = vld [vmem:[%s0 + $0x30] sm:$0xff]
    %v29 = vld [vmem:[%s0 + $0x38] sm:$0xff]
    %v30 = vpack.c.bf16 %v23, %v22
    %v31 = vpack.c.bf16 %v25, %v24
    %v32 = vpack.c.bf16 %v27, %v26
    %v33 = vpack.c.bf16 %v29, %v28
    %v34 = vld [vmem:[%s1] sm:$0xf]
    %v35 = vld [vmem:[%s1 + $0x4] sm:$0xf]
    %v36 = vld [vmem:[%s2] sm:$0x1]
    %v38 = vperm.slane %v36, 0
    %v42 = vunpack.c.l.b16 %v34
    %v43 = vunpack.c.l.b16 %v35
    %v44 = vpack.c.b16 %v43, %v42
    %vm46 = vcmask 130048
    %v48 = vsel %vm46, %v30, 0
    %v51 = vsel %vm46, %v31, 0
    %v54 = vsel %vm46, %v32, 0
    %v57 = vsel %vm46, %v33, 0
    %59 = vmatpush.bf16.msra.mxu0 0
    %60 = vmatpush.bf16.msra.mxu0 0
    %61 = vmatpush.bf16.msra.mxu0 0
    %62 = vmatpush.bf16.msra.mxu0 0
    %63 = vmatpush.bf16.msra.mxu0 0
    %64 = vmatpush.bf16.msra.mxu0 0
    %65 = vmatpush.bf16.msra.mxu0 0
    %66 = vmatpush.bf16.msra.mxu0 %v44
    %67 = vmatmul.bf16.gmra.mxu0 %v48
    %v68 = vpop.f32.mrf.mxu0
    %v69 = vadd.f32 %v38, %v68
    %v70 = vpop.f32.mrf.mxu0
    %v71 = vadd.f32 %v38, %v70
    %72 = vmatmul.bf16.gmra.mxu0 %v51
    %v73 = vpop.f32.mrf.mxu0
    %v74 = vadd.f32 %v38, %v73
    %v75 = vpop.f32.mrf.mxu0
    %v76 = vadd.f32 %v38, %v75
    %77 = vmatmul.bf16.gmra.mxu0 %v54
    %v78 = vpop.f32.mrf.mxu0
    %v79 = vadd.f32 %v38, %v78
    %v80 = vpop.f32.mrf.mxu0
    %v81 = vadd.f32 %v38, %v80
    %82 = vmatmul.bf16.gmra.mxu0 %v57
    %v83 = vpop.f32.mrf.mxu0
    %v84 = vadd.f32 %v38, %v83
    %v85 = vpop.f32.mrf.mxu0
    %v86 = vadd.f32 %v38, %v85
    %87 = vdwg.mxu0
    %v88 = vmax.f32 %v69, 0.0
    %v89 = vmax.f32 %v71, 0.0
    %v90 = vmax.f32 %v74, 0.0
    %v91 = vmax.f32 %v76, 0.0
    %v92 = vmax.f32 %v79, 0.0
    %v93 = vmax.f32 %v81, 0.0
    %v94 = vmax.f32 %v84, 0.0
    %v95 = vmax.f32 %v86, 0.0
    %v96 = vpack.c.bf16 %v89, %v88
    %v97 = vpack.c.bf16 %v91, %v90
    %v98 = vpack.c.bf16 %v93, %v92
    %v99 = vpack.c.bf16 %v95, %v94
    %v100 = vld [vmem:[%s3] sm:$0xf]
    %v101 = vld [vmem:[%s3 + $0x4] sm:$0xf]
    %v102 = vld [vmem:[%s3 + $0x8] sm:$0xf]
    %v103 = vld [vmem:[%s3 + $0xc] sm:$0xf]
    %v104 = vld [vmem:[%s4] sm:$0x1]
    %v106 = vperm.slane %v104, 0
    %v112 = vunpack.c.l.b16 %v100
    %v113 = vunpack.c.l.b16 %v101
    %v114 = vunpack.c.l.b16 %v102
    %v115 = vunpack.c.l.b16 %v103
    %v116 = vpack.c.b16 %v113, %v112
    %v117 = vpack.c.b16 %v115, %v114
    %vm120 = vcmask 261120
    %v122 = vsel %vm120, %v96, 0
    %v125 = vsel %vm120, %v97, 0
    %v128 = vsel %vm120, %v98, 0
    %v131 = vsel %vm120, %v99, 0
    %133 = vmatpush.bf16.msra.mxu0 0
    %134 = vmatpush.bf16.msra.mxu0 0
    %135 = vmatpush.bf16.msra.mxu0 0
    %136 = vmatpush.bf16.msra.mxu0 0
    %137 = vmatpush.bf16.msra.mxu0 0
    %138 = vmatpush.bf16.msra.mxu0 0
    %139 = vmatpush.bf16.msra.mxu0 %v117
    %140 = vmatpush.bf16.msra.mxu0 %v116
    %141 = vmatmul.bf16.gmra.mxu0 %v122
    %v142 = vpop.f32.mrf.mxu0
    %v143 = vadd.f32 %v106, %v142
    %v144 = vpop.f32.mrf.mxu0
    %v145 = vadd.f32 %v106, %v144
    %146 = vmatmul.bf16.gmra.mxu0 %v125
    %v147 = vpop.f32.mrf.mxu0
    %v148 = vadd.f32 %v106, %v147
    %v149 = vpop.f32.mrf.mxu0
    %v150 = vadd.f32 %v106, %v149
    %151 = vmatmul.bf16.gmra.mxu0 %v128
    %v152 = vpop.f32.mrf.mxu0
    %v153 = vadd.f32 %v106, %v152
    %v154 = vpop.f32.mrf.mxu0
    %v155 = vadd.f32 %v106, %v154
    %156 = vmatmul.bf16.gmra.mxu0 %v131
    %v157 = vpop.f32.mrf.mxu0
    %v158 = vadd.f32 %v106, %v157
    %v159 = vpop.f32.mrf.mxu0
    %v160 = vadd.f32 %v106, %v159
    %161 = vdwg.mxu0
    %162 = vmax.xlane.f32.xlu0 %v143
    %v163 = vpop.xlane.xlu0 %162
    %164 = vmax.xlane.f32.xlu0 %v145
    %v165 = vpop.xlane.xlu0 %164
    %166 = vmax.xlane.f32.xlu0 %v148
    %v167 = vpop.xlane.xlu0 %166
    %168 = vmax.xlane.f32.xlu0 %v150
    %v169 = vpop.xlane.xlu0 %168
    %170 = vmax.xlane.f32.xlu0 %v153
    %v171 = vpop.xlane.xlu0 %170
    %172 = vmax.xlane.f32.xlu0 %v155
    %v173 = vpop.xlane.xlu0 %172
    %174 = vmax.xlane.f32.xlu0 %v158
    %v175 = vpop.xlane.xlu0 %174
    %176 = vmax.xlane.f32.xlu0 %v160
    %v177 = vpop.xlane.xlu0 %176
    %v178 = vsub.f32 %v143, %v163
    %v179 = vsub.f32 %v145, %v165
    %v180 = vsub.f32 %v148, %v167
    %v181 = vsub.f32 %v150, %v169
    %v182 = vsub.f32 %v153, %v171
    %v183 = vsub.f32 %v155, %v173
    %v184 = vsub.f32 %v158, %v175
    %v185 = vsub.f32 %v160, %v177
    %v186 = vmul.f32 %v178, 1.442695
    %v187 = vpow.pop %v186
    %v188 = vmul.f32 %v179, 1.442695
    %v189 = vpow.pop %v188
    %v190 = vmul.f32 %v180, 1.442695
    %v191 = vpow.pop %v190
    %v192 = vmul.f32 %v181, 1.442695
    %v193 = vpow.pop %v192
    %v194 = vmul.f32 %v182, 1.442695
    %v195 = vpow.pop %v194
    %v196 = vmul.f32 %v183, 1.442695
    %v197 = vpow.pop %v196
    %v198 = vmul.f32 %v184, 1.442695
    %v199 = vpow.pop %v198
    %v200 = vmul.f32 %v185, 1.442695
    %v201 = vpow.pop %v200
    %202 = vadd.xlane.f32.xlu0 %v187
    %v203 = vpop.xlane.xlu0 %202
    %204 = vadd.xlane.f32.xlu0 %v189
    %v205 = vpop.xlane.xlu0 %204
    %206 = vadd.xlane.f32.xlu0 %v191
    %v207 = vpop.xlane.xlu0 %206
    %208 = vadd.xlane.f32.xlu0 %v193
    %v209 = vpop.xlane.xlu0 %208
    %210 = vadd.xlane.f32.xlu0 %v195
    %v211 = vpop.xlane.xlu0 %210
    %212 = vadd.xlane.f32.xlu0 %v197
    %v213 = vpop.xlane.xlu0 %212
    %214 = vadd.xlane.f32.xlu0 %v199
    %v215 = vpop.xlane.xlu0 %214
    %216 = vadd.xlane.f32.xlu0 %v201
    %v217 = vpop.xlane.xlu0 %216
    %v218 = vrcp.pop %v203
    %v219 = vmul.f32 %v203, %v218
    %v220 = vsub.f32 1.0, %v219
    %v221 = vmul.f32 %v218, %v220
    %v222 = vadd.f32 %v218, %v221
    %vm223 = vweird.f32 %v203
    %vm224 = vweird.f32 %v218
    %vm225 = vmor %vm223, %vm224
    %v226 = vsel %vm225, %v218, %v222
    %v227 = vand.u32 2147483647, %v203
    %vm228 = vcmp.eq.f32.partialorder %v227, 8.507059e+37
    %v229 = vand.u32 %v203, 2147483648
    %v230 = vor.u32 1.1754944e-38, %v229
    %v231 = vsel %vm228, %v230, %v226
    %v232 = vmul.f32 %v187, %v231
    %v233 = vrcp.pop %v205
    %v234 = vmul.f32 %v205, %v233
    %v235 = vsub.f32 1.0, %v234
    %v236 = vmul.f32 %v233, %v235
    %v237 = vadd.f32 %v233, %v236
    %vm238 = vweird.f32 %v205
    %vm239 = vweird.f32 %v233
    %vm240 = vmor %vm238, %vm239
    %v241 = vsel %vm240, %v233, %v237
    %v242 = vand.u32 2147483647, %v205
    %vm243 = vcmp.eq.f32.partialorder %v242, 8.507059e+37
    %v244 = vand.u32 %v205, 2147483648
    %v245 = vor.u32 1.1754944e-38, %v244
    %v246 = vsel %vm243, %v245, %v241
    %v247 = vmul.f32 %v189, %v246
    %v248 = vrcp.pop %v207
    %v249 = vmul.f32 %v207, %v248
    %v250 = vsub.f32 1.0, %v249
    %v251 = vmul.f32 %v248, %v250
    %v252 = vadd.f32 %v248, %v251
    %vm253 = vweird.f32 %v207
    %vm254 = vweird.f32 %v248
    %vm255 = vmor %vm253, %vm254
    %v256 = vsel %vm255, %v248, %v252
    %v257 = vand.u32 2147483647, %v207
    %vm258 = vcmp.eq.f32.partialorder %v257, 8.507059e+37
    %v259 = vand.u32 %v207, 2147483648
    %v260 = vor.u32 1.1754944e-38, %v259
    %v261 = vsel %vm258, %v260, %v256
    %v262 = vmul.f32 %v191, %v261
    %v263 = vrcp.pop %v209
    %v264 = vmul.f32 %v209, %v263
    %v265 = vsub.f32 1.0, %v264
    %v266 = vmul.f32 %v263, %v265
    %v267 = vadd.f32 %v263, %v266
    %vm268 = vweird.f32 %v209
    %vm269 = vweird.f32 %v263
    %vm270 = vmor %vm268, %vm269
    %v271 = vsel %vm270, %v263, %v267
    %v272 = vand.u32 2147483647, %v209
    %vm273 = vcmp.eq.f32.partialorder %v272, 8.507059e+37
    %v274 = vand.u32 %v209, 2147483648
    %v275 = vor.u32 1.1754944e-38, %v274
    %v276 = vsel %vm273, %v275, %v271
    %v277 = vmul.f32 %v193, %v276
    %v278 = vrcp.pop %v211
    %v279 = vmul.f32 %v211, %v278
    %v280 = vsub.f32 1.0, %v279
    %v281 = vmul.f32 %v278, %v280
    %v282 = vadd.f32 %v278, %v281
    %vm283 = vweird.f32 %v211
    %vm284 = vweird.f32 %v278
    %vm285 = vmor %vm283, %vm284
    %v286 = vsel %vm285, %v278, %v282
    %v287 = vand.u32 2147483647, %v211
    %vm288 = vcmp.eq.f32.partialorder %v287, 8.507059e+37
    %v289 = vand.u32 %v211, 2147483648
    %v290 = vor.u32 1.1754944e-38, %v289
    %v291 = vsel %vm288, %v290, %v286
    %v292 = vmul.f32 %v195, %v291
    %v293 = vrcp.pop %v213
    %v294 = vmul.f32 %v213, %v293
    %v295 = vsub.f32 1.0, %v294
    %v296 = vmul.f32 %v293, %v295
    %v297 = vadd.f32 %v293, %v296
    %vm298 = vweird.f32 %v213
    %vm299 = vweird.f32 %v293
    %vm300 = vmor %vm298, %vm299
    %v301 = vsel %vm300, %v293, %v297
    %v302 = vand.u32 2147483647, %v213
    %vm303 = vcmp.eq.f32.partialorder %v302, 8.507059e+37
    %v304 = vand.u32 %v213, 2147483648
    %v305 = vor.u32 1.1754944e-38, %v304
    %v306 = vsel %vm303, %v305, %v301
    %v307 = vmul.f32 %v197, %v306
    %v308 = vrcp.pop %v215
    %v309 = vmul.f32 %v215, %v308
    %v310 = vsub.f32 1.0, %v309
    %v311 = vmul.f32 %v308, %v310
    %v312 = vadd.f32 %v308, %v311
    %vm313 = vweird.f32 %v215
    %vm314 = vweird.f32 %v308
    %vm315 = vmor %vm313, %vm314
    %v316 = vsel %vm315, %v308, %v312
    %v317 = vand.u32 2147483647, %v215
    %vm318 = vcmp.eq.f32.partialorder %v317, 8.507059e+37
    %v319 = vand.u32 %v215, 2147483648
    %v320 = vor.u32 1.1754944e-38, %v319
    %v321 = vsel %vm318, %v320, %v316
    %v322 = vmul.f32 %v199, %v321
    %v323 = vrcp.pop %v217
    %v324 = vmul.f32 %v217, %v323
    %v325 = vsub.f32 1.0, %v324
    %v326 = vmul.f32 %v323, %v325
    %v327 = vadd.f32 %v323, %v326
    %vm328 = vweird.f32 %v217
    %vm329 = vweird.f32 %v323
    %vm330 = vmor %vm328, %vm329
    %v331 = vsel %vm330, %v323, %v327
    %v332 = vand.u32 2147483647, %v217
    %vm333 = vcmp.eq.f32.partialorder %v332, 8.507059e+37
    %v334 = vand.u32 %v217, 2147483648
    %v335 = vor.u32 1.1754944e-38, %v334
    %v336 = vsel %vm333, %v335, %v331
    %v337 = vmul.f32 %v201, %v336
    %338 = vst [vmem:[#allocation2] sm:$0xff] %v232
    %339 = vst [vmem:[#allocation2 + $0x8] sm:$0xff] %v247
    %340 = vst [vmem:[#allocation2 + $0x10] sm:$0xff] %v262
    %341 = vst [vmem:[#allocation2 + $0x18] sm:$0xff] %v277
    %342 = vst [vmem:[#allocation2 + $0x20] sm:$0xff] %v292
    %343 = vst [vmem:[#allocation2 + $0x28] sm:$0xff] %v307
    %344 = vst [vmem:[#allocation2 + $0x30] sm:$0xff] %v322
    %345 = vst [vmem:[#allocation2 + $0x38] sm:$0xff] %v337
    // Predicated region
    $region22: #{tpu_custom_call.1} parent=1 // pred_check
      _
    $region23: #{tpu_custom_call.1} parent=1 // pred_check_branch
      %347 = sbr.rel (0) target = $region25
    $region24: #{tpu_custom_call.1} parent=1 // pred_region
      %349 = vsyncadd [#allocation3], 0
      %s350 = sshll.u32 [#allocation2], 4
      %s351 = int_to_ptr.vmem [resolvable:$true] %s350
      %s352 = sshll.u32 %s5, 4
      %s353 = int_to_ptr.hbm [resolvable:$true] %s352
      %358 = dma.vmem_to_hbm [thread:$0]  %s351, 1024, %s353, [#allocation3], 128, 128, 8
    $region25: #{tpu_custom_call.1} parent=1 // pred_fallthru
      _
    // Predicated region
    $region26: #{tpu_custom_call.1} parent=1 // pred_check
      _
    $region27: #{tpu_custom_call.1} parent=1 // pred_check_branch
      %360 = sbr.rel (0) target = $region29
    $region28: #{tpu_custom_call.1} parent=1 // pred_region
      %362 = dma.done [#allocation3], 1024
    $region29: #{tpu_custom_call.1} parent=1 // pred_fallthru
      _
    %363 = vsyncpa [#allocation3], 1

</llo_original>
